<compile_context>
chip_gen: v7x
topology: tpu7x:2x2x1
jax: 0.10.0
libtpu: 0.0.40
codegen_flags: <defaults>
</compile_context>

<pallas_src>
import math
import jax
import jax.numpy as jnp
from jax.experimental import pallas as pl
from jax.experimental.pallas import tpu as pltpu


def se_kernel(x_ref, w1t_ref, b1_ref, w2t_ref, b2_ref, o_ref):
    """One grid step: `nb` image-groups, each R = g*C dense rows.

    x_ref / o_ref : (nb, R, HWp)   R % sublane_height == 0, HWp % 128 == 0
    w1t_ref       : (R, g*Hc)      kron(I_g, W1^T) with 1/HW folded in (f32)
    b1_ref        : (1, g*Hc)
    w2t_ref       : (g*Hc, R)      kron(I_g, W2^T) (f32)
    b2_ref        : (1, R)
    """
    # ---- Squeeze: spatial sum with f32 accumulation (no full-tile f32 copy).
    # The 1/HW normalization is pre-folded into w1t in the wrapper.
    pooled = jnp.sum(x_ref[...], axis=-1, dtype=jnp.float32)            # (nb, R)

    # ---- Excitation: two tiny matmuls batched over the nb image-groups of
    # this block (block-diagonal over the g images of a group).  Pure latency,
    # not throughput; it hides under the block DMA for reasonable tiles.
    h = jnp.dot(pooled, w1t_ref[...],
                preferred_element_type=jnp.float32) + b1_ref[...]        # (nb, g*Hc)
    h = jnp.maximum(h, 0.0)
    s = jnp.dot(h, w2t_ref[...],
                preferred_element_type=jnp.float32) + b2_ref[...]        # (nb, R)
    s = jax.nn.sigmoid(s)

    # ---- Scale: re-read x from the ref and write straight to the output in
    # the storage dtype (1 vld + 1 vmul + 1 dense vst per vreg).
    o_ref[...] = x_ref[...] * s[:, :, None].astype(o_ref.dtype)


def se_module_forward(x, w1, b1, w2, b2):
    """x: (N, C, H, W) -> (N, C, H, W).  w1: (Hc, C), b1: (Hc,), w2: (C, Hc), b2: (C,)."""
    N, C, H, W = x.shape
    Hc = w1.shape[0]
    HW = H * W
    itemsize = jnp.dtype(x.dtype).itemsize

    # ---- Dense layout -------------------------------------------------------
    # Lanes: pad the spatial dim to a multiple of 128 (dense vld / vst).
    HWp = ((HW + 127) // 128) * 128
    # Sublanes: group g images so g*C rows fill whole sublane tiles.
    row_align = {4: 8, 2: 16, 1: 32}.get(itemsize, 8)
    g = row_align // math.gcd(C, row_align)
    R = g * C
    N_pad = ((N + g - 1) // g) * g
    n_groups = N_pad // g

    x2 = x.reshape(N, C, HW)
    if N_pad != N or HWp != HW:
        x2 = jnp.pad(x2, ((0, N_pad - N), (0, 0), (0, HWp - HW)))
    x2 = x2.reshape(n_groups, R, HWp)

    # ---- Excitation params: f32, transposed, block-diagonal over the g images
    # of a row-group; 1/HW folded into w1 so the kernel uses raw spatial sums.
    gHc = g * Hc
    eye_g = jnp.eye(g, dtype=jnp.float32)
    w1t = jnp.kron(eye_g, jnp.asarray(w1, jnp.float32).T) * (1.0 / float(HW))  # (R, gHc)
    b1r = jnp.tile(jnp.asarray(b1, jnp.float32), g).reshape(1, gHc)            # (1, gHc)
    w2t = jnp.kron(eye_g, jnp.asarray(w2, jnp.float32).T)                       # (gHc, R)
    b2r = jnp.tile(jnp.asarray(b2, jnp.float32), g).reshape(1, R)               # (1, R)

    # ---- Tile sizing / VMEM budget per chip generation ----------------------
    try:
        vmem_cap = int(pltpu.get_tpu_info().vmem_capacity_bytes)
    except Exception:
        vmem_cap = 64 << 20                        # conservative (v7x per-core VMEM)
    if vmem_cap >= (96 << 20):                     # v5e / v6e class: 128 MiB VMEM
        tile_budget, limit_floor, limit_cap = 20 << 20, 32 << 20, 100 << 20
    else:                                          # v7x class: 64 MiB per core
        tile_budget, limit_floor, limit_cap = 5 << 20, 24 << 20, 48 << 20

    bytes_per_group = R * HWp * itemsize           # exact: no hidden sublane/lane padding
    nb = max(1, min(tile_budget // bytes_per_group, n_groups))
    # Prefer >= 2 grid steps so both TensorCores get work on 2-core chips (v7x);
    # costs at most one extra ~0.35us step on single-core chips.
    if n_groups >= 2:
        nb = min(nb, pl.cdiv(n_groups, 2))
    grid = (pl.cdiv(n_groups, nb),)

    tile_bytes = nb * bytes_per_group
    param_bytes = 4 * (2 * R * gHc + gHc + R)
    needed = 4 * tile_bytes + 2 * param_bytes + (4 << 20)  # dbl-buffered in+out + headroom
    vmem_limit = int(min(max(needed, limit_floor), limit_cap))
    if needed > vmem_limit:                                 # single huge tile: last resort
        vmem_limit = int(min(needed, vmem_cap - (12 << 20)))

    out = pl.pallas_call(
        se_kernel,
        out_shape=jax.ShapeDtypeStruct((n_groups, R, HWp), x.dtype),
        grid_spec=pltpu.PrefetchScalarGridSpec(
            num_scalar_prefetch=0,
            grid=grid,
            in_specs=[
                pl.BlockSpec((nb, R, HWp), lambda i: (i, 0, 0)),   # x block (streamed)
                pl.BlockSpec((R, gHc), lambda i: (0, 0)),          # w1^T (resident)
                pl.BlockSpec((1, gHc), lambda i: (0, 0)),          # b1 (row)
                pl.BlockSpec((gHc, R), lambda i: (0, 0)),          # w2^T (resident)
                pl.BlockSpec((1, R), lambda i: (0, 0)),            # b2 (row)
            ],
            out_specs=pl.BlockSpec((nb, R, HWp), lambda i: (i, 0, 0)),
        ),
        compiler_params=pltpu.CompilerParams(
            dimension_semantics=("parallel",),
            vmem_limit_bytes=vmem_limit,
        ),
    )(x2, w1t, b1r, w2t, b2r)

    out = out.reshape(N_pad, C, HWp)
    if N_pad != N or HWp != HW:
        out = out[:N, :, :HW]
    return out.reshape(N, C, H, W)


def _reference(x, w1, b1, w2, b2):
    # Pure-JAX reference for validation.
    pooled = jnp.mean(x.astype(jnp.float32), axis=(2, 3))             # (N, C)
    h = jnp.maximum(pooled @ w1.T + b1, 0.0)                          # (N, Hc)
    s = jax.nn.sigmoid(h @ w2.T + b2)                                 # (N, C)
    return x * s[:, :, None, None].astype(x.dtype)


if __name__ == "__main__":
    # SEModule(channels=4, reduction=2):
    #   hidden_channels = ceil(max(4 // 2, 1) / 8) * 8 = 8   (as in the PyTorch module)
    channels, reduction = 4, 2
    hidden = math.ceil(max(channels // reduction, 1) / 8) * 8
    N, H, W = 2, 16, 16

    key = jax.random.PRNGKey(0)
    kx, k1, kb1, k2, kb2 = jax.random.split(key, 5)

    x = jax.random.normal(kx, (N, channels, H, W), dtype=jnp.float32)

    # Conv2d-style uniform init for 1x1 kernels -> plain (out_ch, in_ch) matrices.
    bound1 = 1.0 / math.sqrt(channels)
    w1 = jax.random.uniform(k1, (hidden, channels), jnp.float32, -bound1, bound1)
    b1 = jax.random.uniform(kb1, (hidden,), jnp.float32, -bound1, bound1)
    bound2 = 1.0 / math.sqrt(hidden)
    w2 = jax.random.uniform(k2, (channels, hidden), jnp.float32, -bound2, bound2)
    b2 = jax.random.uniform(kb2, (channels,), jnp.float32, -bound2, bound2)

    y = se_module_forward(x, w1, b1, w2, b2)
    y = jax.block_until_ready(y)

    y_ref = _reference(x, w1, b1, w2, b2)
    assert jnp.allclose(y, y_ref, atol=1e-5, rtol=1e-5), "mismatch vs reference"

    print("KERNEL_OK")
</pallas_src>

<mosaic_0001>
module attributes {stable_mosaic.version = 11 : i64} {
  func.func @se_kernel(%arg0: i32, %arg1: memref<1x8x256xf32, #tpu.memory_space<vmem>>, %arg2: memref<8x16xf32, #tpu.memory_space<vmem>>, %arg3: memref<1x16xf32, #tpu.memory_space<vmem>>, %arg4: memref<16x8xf32, #tpu.memory_space<vmem>>, %arg5: memref<1x8xf32, #tpu.memory_space<vmem>>, %arg6: memref<1x8x256xf32, #tpu.memory_space<vmem>>) attributes {dimension_semantics = [#tpu.dimension_semantics<parallel>], iteration_bounds = array<i64: 1>, scalar_prefetch = 0 : i64, scratch_operands = 0 : i64, tpu.core_type = #tpu.core_type<tc>, window_params = [{transform_indices = @transform_0, window_bounds = array<i64: 1, 8, 256>}, {pipeline_mode = #tpu.pipeline_mode<synchronous>, transform_indices = @transform_1, window_bounds = array<i64: 8, 16>}, {pipeline_mode = #tpu.pipeline_mode<synchronous>, transform_indices = @transform_2, window_bounds = array<i64: 1, 16>}, {pipeline_mode = #tpu.pipeline_mode<synchronous>, transform_indices = @transform_3, window_bounds = array<i64: 16, 8>}, {pipeline_mode = #tpu.pipeline_mode<synchronous>, transform_indices = @transform_4, window_bounds = array<i64: 1, 8>}, {transform_indices = @transform_5, window_bounds = array<i64: 1, 8, 256>}]} {
    %c0 = arith.constant 0 : index
    %c0_0 = arith.constant 0 : index
    %c0_1 = arith.constant 0 : index
    %0 = vector.load %arg1[%c0, %c0_0, %c0_1] : memref<1x8x256xf32, #tpu.memory_space<vmem>>, vector<1x8x256xf32>
    %cst = arith.constant dense<0.000000e+00> : vector<1x8xf32>
    %1 = vector.multi_reduction <add>, %0, %cst [2] : vector<1x8x256xf32> to vector<1x8xf32>
    %c0_2 = arith.constant 0 : index
    %c0_3 = arith.constant 0 : index
    %2 = vector.load %arg2[%c0_2, %c0_3] : memref<8x16xf32, #tpu.memory_space<vmem>>, vector<8x16xf32>
    %cst_4 = arith.constant dense<0.000000e+00> : vector<1x16xf32>
    %3 = tpu.matmul %1, %2, %cst_4 {dimension_numbers = #tpu.dot_dimension_numbers<[1], [0], [0], [1], [0, 0, 1, 1], [], []>} : vector<1x8xf32>, vector<8x16xf32>, vector<1x16xf32> -> vector<1x16xf32>
    %c0_5 = arith.constant 0 : index
    %c0_6 = arith.constant 0 : index
    %4 = vector.load %arg3[%c0_5, %c0_6] : memref<1x16xf32, #tpu.memory_space<vmem>>, vector<1x16xf32>
    %5 = arith.addf %3, %4 : vector<1x16xf32>
    %cst_7 = arith.constant 0.000000e+00 : f32
    %6 = vector.broadcast %cst_7 : f32 to vector<1x16xf32>
    %7 = arith.maximumf %5, %6 : vector<1x16xf32>
    %c0_8 = arith.constant 0 : index
    %c0_9 = arith.constant 0 : index
    %8 = vector.load %arg4[%c0_8, %c0_9] : memref<16x8xf32, #tpu.memory_space<vmem>>, vector<16x8xf32>
    %cst_10 = arith.constant dense<0.000000e+00> : vector<1x8xf32>
    %9 = tpu.matmul %7, %8, %cst_10 {dimension_numbers = #tpu.dot_dimension_numbers<[1], [0], [0], [1], [0, 0, 1, 1], [], []>} : vector<1x16xf32>, vector<16x8xf32>, vector<1x8xf32> -> vector<1x8xf32>
    %c0_11 = arith.constant 0 : index
    %c0_12 = arith.constant 0 : index
    %10 = vector.load %arg5[%c0_11, %c0_12] : memref<1x8xf32, #tpu.memory_space<vmem>>, vector<1x8xf32>
    %11 = arith.addf %9, %10 : vector<1x8xf32>
    %12 = arith.negf %11 : vector<1x8xf32>
    %13 = math.exp %12 : vector<1x8xf32>
    %cst_13 = arith.constant 1.000000e+00 : f32
    %14 = vector.broadcast %cst_13 : f32 to vector<1x8xf32>
    %15 = arith.addf %14, %13 : vector<1x8xf32>
    %16 = arith.divf %14, %15 : vector<1x8xf32>
    %c0_14 = arith.constant 0 : index
    %c0_15 = arith.constant 0 : index
    %c0_16 = arith.constant 0 : index
    %17 = vector.load %arg1[%c0_14, %c0_15, %c0_16] : memref<1x8x256xf32, #tpu.memory_space<vmem>>, vector<1x8x256xf32>
    %18 = vector.shape_cast %16 : vector<1x8xf32> to vector<1x8x1xf32>
    %19 = vector.broadcast %18 : vector<1x8x1xf32> to vector<1x8x256xf32>
    %20 = arith.mulf %17, %19 : vector<1x8x256xf32>
    %c0_17 = arith.constant 0 : index
    %c0_18 = arith.constant 0 : index
    %c0_19 = arith.constant 0 : index
    %21 = vector.load %arg6[%c0_17, %c0_18, %c0_19] : memref<1x8x256xf32, #tpu.memory_space<vmem>>, vector<1x8x256xf32>
    tpu.vector_store %arg6[%c0_17, %c0_18, %c0_19], %20 {strides = array<i32>} : memref<1x8x256xf32, #tpu.memory_space<vmem>>, vector<1x8x256xf32>,
    return
  }
  func.func @transform_0(%arg0: i32) -> (i32, i32, i32) {
    %c0_i32 = arith.constant 0 : i32
    %c0_i32_0 = arith.constant 0 : i32
    %c0_i32_1 = arith.constant 0 : i32
    return %arg0, %c0_i32, %c0_i32_0 : i32, i32, i32
  }
  func.func @transform_1(%arg0: i32) -> (i32, i32) {
    %c0_i32 = arith.constant 0 : i32
    %c0_i32_0 = arith.constant 0 : i32
    %c0_i32_1 = arith.constant 0 : i32
    return %c0_i32, %c0_i32_0 : i32, i32
  }
  func.func @transform_2(%arg0: i32) -> (i32, i32) {
    %c0_i32 = arith.constant 0 : i32
    %c0_i32_0 = arith.constant 0 : i32
    %c0_i32_1 = arith.constant 0 : i32
    return %c0_i32, %c0_i32_0 : i32, i32
  }
  func.func @transform_3(%arg0: i32) -> (i32, i32) {
    %c0_i32 = arith.constant 0 : i32
    %c0_i32_0 = arith.constant 0 : i32
    %c0_i32_1 = arith.constant 0 : i32
    return %c0_i32, %c0_i32_0 : i32, i32
  }
  func.func @transform_4(%arg0: i32) -> (i32, i32) {
    %c0_i32 = arith.constant 0 : i32
    %c0_i32_0 = arith.constant 0 : i32
    %c0_i32_1 = arith.constant 0 : i32
    return %c0_i32, %c0_i32_0 : i32, i32
  }
  func.func @transform_5(%arg0: i32) -> (i32, i32, i32) {
    %c0_i32 = arith.constant 0 : i32
    %c0_i32_0 = arith.constant 0 : i32
    %c0_i32_1 = arith.constant 0 : i32
    return %arg0, %c0_i32, %c0_i32_0 : i32, i32, i32
  }
}

</mosaic_0001>

<llo_original>
// kernel: tpu_custom_call.1
$region0: #{tpu_custom_call.1}
  #allocation0 [shape = 'u32[]', space=smem, size = 0x4, offset = 0x4, fixed_abs, tag = 'smem constant byte address 0x4 - core index']
  #allocation1 [shape = 'u32[144,128]{1,0:T(1,128)}', space=vmem, size = 0x12000, scoped, tag = 'internal scratch']
  %s0 = inlined_call_operand.vmem [shape: f32[1,8,256], index: 0, kind: input, shape index: {}]
  %s1 = inlined_call_operand.vmem [shape: f32[8,16], index: 1, kind: input, shape index: {}]
  %s2 = inlined_call_operand.vmem [shape: f32[1,16], index: 2, kind: input, shape index: {}]
  %s3 = inlined_call_operand.vmem [shape: f32[16,8], index: 3, kind: input, shape index: {}]
  %s4 = inlined_call_operand.vmem [shape: f32[1,8], index: 4, kind: input, shape index: {}]
  %s5 = inlined_call_operand.hbm [shape: f32[1,8,256], index: 5, kind: output, shape index: {}]
  %s6 = sld [smem:[#allocation0]]
  $region30: #{tpu_custom_call.1} parent=0
    _
  %s8 = ssub.s32 1, %s6
  %s9 = scalar_select 0, %s8, %s6
  $region1: #{tpu_custom_call.1} parent=0
    #allocation2 [shape = 'u8[8192]{0}', space=vmem, size = 0x2000, scoped, tag = 'output window, operand 0, single buffered']
    #allocation3 [shape = 's32[1]{0}', space=sflag, size = 0x4, scoped, tag = 'scoped memory for tpu_custom_call.1']
    %10 = vsyncpa [#allocation3], 0
    // Predicated region
    $region2: #{tpu_custom_call.1} parent=1 // pred_check
      _
    $region3: #{tpu_custom_call.1} parent=1 // pred_check_branch
      %12 = sbr.rel (0) target = $region5
    $region4: #{tpu_custom_call.1} parent=1 // pred_region
      _
    $region5: #{tpu_custom_call.1} parent=1 // pred_fallthru
      _
    // Predicated region
    $region6: #{tpu_custom_call.1} parent=1 // pred_check
      _
    $region7: #{tpu_custom_call.1} parent=1 // pred_check_branch
      %14 = sbr.rel (0) target = $region9
    $region8: #{tpu_custom_call.1} parent=1 // pred_region
      _
    $region9: #{tpu_custom_call.1} parent=1 // pred_fallthru
      _
    // Predicated region
    $region10: #{tpu_custom_call.1} parent=1 // pred_check
      _
    $region11: #{tpu_custom_call.1} parent=1 // pred_check_branch
      %16 = sbr.rel (0) target = $region13
    $region12: #{tpu_custom_call.1} parent=1 // pred_region
      _
    $region13: #{tpu_custom_call.1} parent=1 // pred_fallthru
      _
    // Predicated region
    $region14: #{tpu_custom_call.1} parent=1 // pred_check
      _
    $region15: #{tpu_custom_call.1} parent=1 // pred_check_branch
      %18 = sbr.rel (0) target = $region17
    $region16: #{tpu_custom_call.1} parent=1 // pred_region
      _
    $region17: #{tpu_custom_call.1} parent=1 // pred_fallthru
      _
    // Predicated region
    $region18: #{tpu_custom_call.1} parent=1 // pred_check
      _
    $region19: #{tpu_custom_call.1} parent=1 // pred_check_branch
      %20 = sbr.rel (0) target = $region21
    $region20: #{tpu_custom_call.1} parent=1 // pred_region
      _
    $region21: #{tpu_custom_call.1} parent=1 // pred_fallthru
      _
    %v21 = vld [vmem:[%s0] sm:$0xff]
    %v22 = vld [vmem:[%s0 + $0x8] sm:$0xff]
    %v23 = vadd.f32 %v21, %v22
    %24 = vadd.xlane.f32.xlu0 %v23
    %v25 = vpop.xlane.xlu0 %24
    %v26 = vld [vmem:[%s1] sm:$0xff]
    %v27 = vld [vmem:[%s2] sm:$0x1]
    %v29 = vlaneseq
    %v30 = vand.u32 %v29, 127
    %v31 = vlaneseq
    %v32 = vshrl.u32 %v31, 7
    %v33 = vsub.s32 %v30, %v32
    %v34 = vrot.slane %v25, %v33
    %vm35 = vcmask 64512
    %v36 = vsel %vm35, %v34, 0
    %38 = vmatprep.subr.mxu0 0.0
    %39 = vmatpush1.msra.mxu0 %v26
    %40 = vmatprep.subr.mxu0 0.0
    %41 = vmatpush1.msra.mxu0 0.0
    %42 = vmatprep.subr.mxu0 0.0
    %43 = vmatpush1.msra.mxu0 0.0
    %44 = vmatprep.subr.mxu0 0.0
    %45 = vmatpush1.msra.mxu0 0.0
    %46 = vmatprep.subr.mxu0 0.0
    %47 = vmatpush1.msra.mxu0 0.0
    %48 = vmatprep.subr.mxu0 0.0
    %49 = vmatpush1.msra.mxu0 0.0
    %50 = vmatprep.subr.mxu0 0.0
    %51 = vmatpush1.msra.mxu0 0.0
    %52 = vmatprep.subr.mxu0 0.0
    %53 = vmatpush1.msra.mxu0 0.0
    %54 = vmatprep.subr.mxu0 0.0
    %55 = vmatpush1.msra.mxu0 0.0
    %56 = vmatprep.subr.mxu0 0.0
    %57 = vmatpush1.msra.mxu0 0.0
    %58 = vmatprep.subr.mxu0 0.0
    %59 = vmatpush1.msra.mxu0 0.0
    %60 = vmatprep.subr.mxu0 0.0
    %61 = vmatpush1.msra.mxu0 0.0
    %62 = vmatprep.subr.mxu0 0.0
    %63 = vmatpush1.msra.mxu0 0.0
    %64 = vmatprep.subr.mxu0 0.0
    %65 = vmatpush1.msra.mxu0 0.0
    %66 = vmatprep.subr.mxu0 0.0
    %67 = vmatpush1.msra.mxu0 0.0
    %68 = vmatprep.subr.mxu0 0.0
    %69 = vmatpush1.msra.mxu0 0.0
    %70 = vmatprep.subr.mxu0 0.0
    %71 = vmatpush1.msra.mxu0 0.0
    %72 = vmatprep.subr.mxu0 0.0
    %73 = vmatpush1.msra.mxu0 0.0
    %74 = vmatprep.subr.mxu0 0.0
    %75 = vmatpush1.msra.mxu0 0.0
    %76 = vmatprep.subr.mxu0 0.0
    %77 = vmatpush1.msra.mxu0 0.0
    %78 = vmatprep.subr.mxu0 0.0
    %79 = vmatpush1.msra.mxu0 0.0
    %80 = vmatprep.subr.mxu0 0.0
    %81 = vmatpush1.msra.mxu0 0.0
    %82 = vmatprep.subr.mxu0 0.0
    %83 = vmatpush1.msra.mxu0 0.0
    %84 = vmatprep.subr.mxu0 0.0
    %85 = vmatpush1.msra.mxu0 0.0
    %86 = vmatprep.subr.mxu0 0.0
    %87 = vmatpush1.msra.mxu0 0.0
    %88 = vmatprep.subr.mxu0 0.0
    %89 = vmatpush1.msra.mxu0 0.0
    %90 = vmatprep.subr.mxu0 0.0
    %91 = vmatpush1.msra.mxu0 0.0
    %92 = vmatprep.subr.mxu0 0.0
    %93 = vmatpush1.msra.mxu0 0.0
    %94 = vmatprep.subr.mxu0 0.0
    %95 = vmatpush1.msra.mxu0 0.0
    %96 = vmatprep.subr.mxu0 0.0
    %97 = vmatpush1.msra.mxu0 0.0
    %98 = vmatprep.subr.mxu0 0.0
    %99 = vmatpush1.msra.mxu0 0.0
    %100 = vmatprep.subr.mxu0 0.0
    %101 = vmatpush1.msra.mxu0 0.0
    %102 = vmatprep.mubr.f32.mxu0 0.0
    %103 = vmatmul.mubr.f32.gmra.mrb[0].mxu0 %v36
    %v104 = vpop.f32.mrb[0].mxu0
    %v105 = vadd.f32 %v27, %v104
    %v106 = vpop.f32.mrb[0].mxu0
    %107 = vdwg.mxu0
    %v108 = vmax.f32 %v105, 0.0
    %v109 = vld [vmem:[%s3] sm:$0xff]
    %v110 = vld [vmem:[%s3 + $0x8] sm:$0xff]
    %v111 = vld [vmem:[%s4] sm:$0x1]
    %vm112 = vcmask 130048
    %v114 = vsel %vm112, %v108, 0
    %116 = vmatprep.subr.mxu0 0.0
    %117 = vmatpush1.msra.mxu0 %v109
    %118 = vmatprep.subr.mxu0 0.0
    %119 = vmatpush1.msra.mxu0 %v110
    %120 = vmatprep.subr.mxu0 0.0
    %121 = vmatpush1.msra.mxu0 0.0
    %122 = vmatprep.subr.mxu0 0.0
    %123 = vmatpush1.msra.mxu0 0.0
    %124 = vmatprep.subr.mxu0 0.0
    %125 = vmatpush1.msra.mxu0 0.0
    %126 = vmatprep.subr.mxu0 0.0
    %127 = vmatpush1.msra.mxu0 0.0
    %128 = vmatprep.subr.mxu0 0.0
    %129 = vmatpush1.msra.mxu0 0.0
    %130 = vmatprep.subr.mxu0 0.0
    %131 = vmatpush1.msra.mxu0 0.0
    %132 = vmatprep.subr.mxu0 0.0
    %133 = vmatpush1.msra.mxu0 0.0
    %134 = vmatprep.subr.mxu0 0.0
    %135 = vmatpush1.msra.mxu0 0.0
    %136 = vmatprep.subr.mxu0 0.0
    %137 = vmatpush1.msra.mxu0 0.0
    %138 = vmatprep.subr.mxu0 0.0
    %139 = vmatpush1.msra.mxu0 0.0
    %140 = vmatprep.subr.mxu0 0.0
    %141 = vmatpush1.msra.mxu0 0.0
    %142 = vmatprep.subr.mxu0 0.0
    %143 = vmatpush1.msra.mxu0 0.0
    %144 = vmatprep.subr.mxu0 0.0
    %145 = vmatpush1.msra.mxu0 0.0
    %146 = vmatprep.subr.mxu0 0.0
    %147 = vmatpush1.msra.mxu0 0.0
    %148 = vmatprep.subr.mxu0 0.0
    %149 = vmatpush1.msra.mxu0 0.0
    %150 = vmatprep.subr.mxu0 0.0
    %151 = vmatpush1.msra.mxu0 0.0
    %152 = vmatprep.subr.mxu0 0.0
    %153 = vmatpush1.msra.mxu0 0.0
    %154 = vmatprep.subr.mxu0 0.0
    %155 = vmatpush1.msra.mxu0 0.0
    %156 = vmatprep.subr.mxu0 0.0
    %157 = vmatpush1.msra.mxu0 0.0
    %158 = vmatprep.subr.mxu0 0.0
    %159 = vmatpush1.msra.mxu0 0.0
    %160 = vmatprep.subr.mxu0 0.0
    %161 = vmatpush1.msra.mxu0 0.0
    %162 = vmatprep.subr.mxu0 0.0
    %163 = vmatpush1.msra.mxu0 0.0
    %164 = vmatprep.subr.mxu0 0.0
    %165 = vmatpush1.msra.mxu0 0.0
    %166 = vmatprep.subr.mxu0 0.0
    %167 = vmatpush1.msra.mxu0 0.0
    %168 = vmatprep.subr.mxu0 0.0
    %169 = vmatpush1.msra.mxu0 0.0
    %170 = vmatprep.subr.mxu0 0.0
    %171 = vmatpush1.msra.mxu0 0.0
    %172 = vmatprep.subr.mxu0 0.0
    %173 = vmatpush1.msra.mxu0 0.0
    %174 = vmatprep.subr.mxu0 0.0
    %175 = vmatpush1.msra.mxu0 0.0
    %176 = vmatprep.subr.mxu0 0.0
    %177 = vmatpush1.msra.mxu0 0.0
    %178 = vmatprep.subr.mxu0 0.0
    %179 = vmatpush1.msra.mxu0 0.0
    %180 = vmatprep.mubr.f32.mxu0 0.0
    %181 = vmatmul.mubr.f32.gmra.mrb[0].mxu0 %v114
    %v182 = vpop.f32.mrb[0].mxu0
    %v183 = vadd.f32 %v111, %v182
    %v184 = vpop.f32.mrb[0].mxu0
    %185 = vdwg.mxu0
    %v186 = vxor.u32 %v183, 2147483648
    %v187 = vmul.f32 %v186, 1.442695
    %v188 = vpow.pop %v187
    %v189 = vadd.f32 %v188, 1.0
    %v190 = vrcp.pop %v189
    %v191 = vmul.f32 1.0, %v190
    %v192 = vlaneseq
    %v193 = vshrl.u32 %v192, 7
    %v194 = vsub.s32 0, %v193
    %v195 = vrot.slane %v191, %v194
    %197 = vbcast.lane.b32.xlu0 %v195, 256
    %v198 = vpop.permute.xlu0 %197
    %v199 = vmul.f32 %v21, %v198
    %v200 = vmul.f32 %v22, %v198
    %201 = vst [vmem:[#allocation2] sm:$0xff] %v199
    %202 = vst [vmem:[#allocation2 + $0x8] sm:$0xff] %v200
    // Predicated region
    $region22: #{tpu_custom_call.1} parent=1 // pred_check
      _
    $region23: #{tpu_custom_call.1} parent=1 // pred_check_branch
      %204 = sbr.rel (0) target = $region25
    $region24: #{tpu_custom_call.1} parent=1 // pred_region
      %s206 = ssub.s32 256, 256
      %207 = vsyncadd [#allocation3], %s206
      %s209 = sshll.u32 [#allocation2], 4
      %s210 = int_to_ptr.vmem [resolvable:$true] %s209
      %212 = dma.vmem_to_hbm [thread:$0]  %s210, 256, %s5, [#allocation3]
    $region25: #{tpu_custom_call.1} parent=1 // pred_fallthru
      _
    // Predicated region
    $region26: #{tpu_custom_call.1} parent=1 // pred_check
      _
    $region27: #{tpu_custom_call.1} parent=1 // pred_check_branch
      %214 = sbr.rel (0) target = $region29
    $region28: #{tpu_custom_call.1} parent=1 // pred_region
      %215 = dma.done [#allocation3], 256
    $region29: #{tpu_custom_call.1} parent=1 // pred_fallthru
      _
    %216 = vsyncpa [#allocation3], 1

</llo_original>
